<compile_context>
chip_gen: v5e
topology: v5e:2x2
jax: 0.10.0
libtpu: 0.0.40
codegen_flags: <defaults>
</compile_context>

<pallas_src>
import math
import jax
import jax.numpy as jnp
from jax.experimental import pallas as pl
from jax.experimental.pallas import tpu as pltpu


# ------------------------------- wrapper ----------------------------------- #
def st_graphattn_forward(x, sadj, fadj, ahat, params, *, adj_dtype=jnp.float32):
    N, DIN = x.shape
    p = params
    H1 = p["s1w1"].shape[1]
    H2 = p["s1w2"].shape[1]
    HATT = p["aw1"].shape[1]
    H3 = p["g1w"].shape[1]
    f32 = jnp.float32

    assert N % 8 == 0, "TODO(synk): pad N to a multiple of 8 for general graphs"
    assert 4 * H1 <= 128 and 4 * H2 <= 128, "packed slab assumes <=128-lane blocks"

    def blockdiag(blocks):
        rows = sum(b.shape[0] for b in blocks)
        cols = sum(b.shape[1] for b in blocks)
        out = jnp.zeros((rows, cols), f32)
        r = c = 0
        for b in blocks:
            out = out.at[r:r + b.shape[0], c:c + b.shape[1]].set(b)
            r += b.shape[0]
            c += b.shape[1]
        return out

    # ---- fused weights --------------------------------------------------- #
    # Layer-1 columns: [s1w1 | cw1 | cw1 | s2w1]  (cw1 duplicated so each
    # adjacency branch reads a contiguous lane slice).
    w1cat = jnp.concatenate([p["s1w1"], p["cw1"], p["cw1"], p["s2w1"]], axis=1)
    # Layer-2: single 128x128 block-diagonal so [hs|hf] projects in one matmul.
    w2big = blockdiag([p["s1w2"], p["cw2"], p["cw2"], p["s2w2"]])
    # Final GCNConv2 folded with fc:  wf = g2w @ fcw (col 0 of a 128-lane pad),
    # bf = g2b @ fcw + fcb (scalar, rides in SMEM).
    wf_col = jnp.dot(p["g2w"], p["fcw"])                                    # (H3, 1)
    wf_pad = jnp.zeros((H3, 128), f32).at[:, :1].set(wf_col)
    bias1cat = jnp.concatenate([p["s1b1"], p["cb1"], p["cb1"], p["s2b1"]], axis=1)
    bias2cat = jnp.concatenate([p["s1b2"], p["cb2"], p["cb2"], p["s2b2"]], axis=1)

    # ---- one packed (rows, 128) parameter slab --------------------------- #
    blocks, off = [], {}

    def add(name, a):
        rpad = ((a.shape[0] + 7) // 8) * 8          # 8-aligned row offsets
        off[name] = sum(b.shape[0] for b in blocks)
        blocks.append(jnp.zeros((rpad, 128), f32).at[:a.shape[0], :a.shape[1]].set(a))

    add("w1", w1cat)           # (DIN, 4*H1)
    add("w2", w2big)           # (4*H1, 4*H2)
    add("g1w", p["g1w"])       # (H2, H3)
    add("aw1", p["aw1"])       # (H2, HATT)
    add("wf", wf_pad)          # (H3, 128)
    vec = jnp.zeros((8, 128), f32)
    vec = vec.at[0, :4 * H1].set(bias1cat[0])       # layer-1 bias (after lane-concat)
    vec = vec.at[1, :4 * H2].set(bias2cat[0])       # layer-2 bias
    vec = vec.at[2, :H3].set(p["g1b"][0])           # GCNConv1 bias
    vec = vec.at[3, :HATT].set(p["ab1"][0])         # attention Linear bias
    vec = vec.at[4, :HATT].set(p["aw2"][:, 0])      # attention aw2^T
    add("vec", vec)
    prm = jnp.concatenate(blocks, axis=0)           # (R, 128), R multiple of 8

    bf = (jnp.dot(p["g2b"], p["fcw"]) + p["fcb"]).reshape(1, 1)             # (1, 1)

    OW1, OW2, OG1W, OAW1, OWF, OV = (off["w1"], off["w2"], off["g1w"],
                                     off["aw1"], off["wf"], off["vec"])

    # --------------------------- Pallas kernel ---------------------------- #
    def kernel(x_ref, sadj_ref, fadj_ref, ahat_ref, prm_ref, bf_ref, o_ref):
        x_ = x_ref[...]
        sadj_ = sadj_ref[...]
        fadj_ = fadj_ref[...]
        ahat_ = ahat_ref[...]
        adt = sadj_.dtype      # matmul operand dtype for adjacency hops

        # Static, 8-aligned slices of the packed parameter slab (views).
        w1cat_ = prm_ref[OW1:OW1 + DIN, 0:4 * H1]
        w2big_ = prm_ref[OW2:OW2 + 4 * H1, 0:4 * H2]
        g1w_ = prm_ref[OG1W:OG1W + H2, 0:H3]
        aw1_ = prm_ref[OAW1:OAW1 + H2, 0:HATT]
        wf_ = prm_ref[OWF:OWF + H3, :]
        bias1_ = prm_ref[OV + 0:OV + 1, 0:4 * H1]
        bias2_ = prm_ref[OV + 1:OV + 2, 0:4 * H2]
        g1b_ = prm_ref[OV + 2:OV + 3, 0:H3]
        ab1_ = prm_ref[OV + 3:OV + 4, 0:HATT]
        aw2_ = prm_ref[OV + 4:OV + 5, 0:HATT]

        # ---- GCN layer 1: one wide shared projection + one matmul per adj --
        sup = jnp.dot(x_, w1cat_, preferred_element_type=jnp.float32)       # (N, 4*H1)
        hs = jnp.dot(sadj_, sup[:, :2 * H1].astype(adt),
                     preferred_element_type=jnp.float32)                    # (N, 2*H1)
        hf = jnp.dot(fadj_, sup[:, 2 * H1:].astype(adt),
                     preferred_element_type=jnp.float32)
        # relu(x + b) commutes with the lane-concat; dropout = identity (eval).
        h12 = jnp.maximum(jnp.concatenate([hs, hf], axis=1) + bias1_, 0.0)  # (N, 4*H1)

        # ---- GCN layer 2: one block-diag projection + one matmul per adj ---
        sup2 = jnp.dot(h12, w2big_, preferred_element_type=jnp.float32)     # (N, 4*H2)
        out_s = jnp.dot(sadj_, sup2[:, :2 * H2].astype(adt),
                        preferred_element_type=jnp.float32) + bias2_[:, :2 * H2]
        out_f = jnp.dot(fadj_, sup2[:, 2 * H2:].astype(adt),
                        preferred_element_type=jnp.float32) + bias2_[:, 2 * H2:]

        emb1 = out_s[:, :H2]           # SGCN1(x, sadj)
        com1 = out_s[:, H2:]           # CGCN(x, sadj)
        com2 = out_f[:, :H2]           # CGCN(x, fadj)
        emb2 = out_f[:, H2:]           # SGCN2(x, fadj)
        xcom = (com1 + com2) * 0.5

        # ---- Attention over the 3 views: single stacked chain --------------
        z3 = jnp.concatenate([emb1, emb2, xcom], axis=0)                    # (3N, H2)
        h_att = jnp.tanh(jnp.dot(z3, aw1_, preferred_element_type=jnp.float32) + ab1_)
        # (HATT,1) projection as VPU multiply + lane reduction (no Nout=1 matmul).
        score = jnp.sum(h_att * aw2_, axis=-1, keepdims=True)               # (3N, 1)
        s1 = score[:N]
        s2 = score[N:2 * N]
        s3 = score[2 * N:]
        m = jnp.maximum(jnp.maximum(s1, s2), s3)
        e1 = jnp.exp(s1 - m)
        e2 = jnp.exp(s2 - m)
        e3 = jnp.exp(s3 - m)
        inv = 1.0 / (e1 + e2 + e3)     # exact: approx bought nothing on (N,1)
        emb = (e1 * inv) * emb1 + (e2 * inv) * emb2 + (e3 * inv) * xcom

        # ---- GCNConv1 + relu ------------------------------------------------
        h1 = jnp.maximum(
            jnp.dot(ahat_,
                    jnp.dot(emb, g1w_, preferred_element_type=jnp.float32).astype(adt),
                    preferred_element_type=jnp.float32) + g1b_,
            0.0)                                                            # (N, H3)

        # ---- GCNConv2 folded with fc, reassociated --------------------------
        # (ahat @ h1) @ wf: the (N,N) hop contracts into H3 lanes, not 128.
        ah1 = jnp.dot(ahat_, h1.astype(adt), preferred_element_type=jnp.float32)
        o_ref[...] = jnp.dot(ah1, wf_, preferred_element_type=jnp.float32) + bf_ref[0, 0]

    # ------------------------------ call ----------------------------------- #
    vmem = pl.BlockSpec(memory_space=pltpu.MemorySpace.VMEM)
    smem = pl.BlockSpec(memory_space=pltpu.MemorySpace.SMEM)

    inputs = (x.astype(f32), sadj.astype(adj_dtype), fadj.astype(adj_dtype),
              ahat.astype(adj_dtype), prm, bf)

    out_pad = pl.pallas_call(
        kernel,
        out_shape=jax.ShapeDtypeStruct((N, 128), jnp.float32),
        in_specs=[vmem, vmem, vmem, vmem, vmem, smem],
        out_specs=vmem,
        # 32 MiB is ample at this size and safe on every generation
        # (v5e scoped default is only 16 MiB).  See TODO(synk) above for the
        # per-generation limits when N grows.
        compiler_params=pltpu.CompilerParams(vmem_limit_bytes=32 * 1024 * 1024),
    )(*inputs)
    return out_pad[:, :1]


# ------------------------------- glue / init ------------------------------ #
def make_params(key, din, h1, h2, hatt, h3, h4):
    ks = jax.random.split(key, 32)
    k = iter(range(32))

    def u(kk, shape, scale):
        return jax.random.uniform(kk, shape, jnp.float32, -scale, scale)

    def gc_pair(kk1, kk2, fin, fout):
        stdv = 1.0 / math.sqrt(fout)
        return u(kk1, (fin, fout), stdv), u(kk2, (1, fout), stdv)

    p = {}
    # SGCN1 / SGCN2 / CGCN : two GraphConvolution layers each
    p["s1w1"], p["s1b1"] = gc_pair(ks[next(k)], ks[next(k)], din, h1)
    p["s1w2"], p["s1b2"] = gc_pair(ks[next(k)], ks[next(k)], h1, h2)
    p["s2w1"], p["s2b1"] = gc_pair(ks[next(k)], ks[next(k)], din, h1)
    p["s2w2"], p["s2b2"] = gc_pair(ks[next(k)], ks[next(k)], h1, h2)
    p["cw1"], p["cb1"] = gc_pair(ks[next(k)], ks[next(k)], din, h1)
    p["cw2"], p["cb2"] = gc_pair(ks[next(k)], ks[next(k)], h1, h2)
    # Attention: Linear(h2, hatt) + Tanh + Linear(hatt, 1, bias=False)
    p["aw1"] = u(ks[next(k)], (h2, hatt), 1.0 / math.sqrt(h2))
    p["ab1"] = u(ks[next(k)], (1, hatt), 1.0 / math.sqrt(h2))
    p["aw2"] = u(ks[next(k)], (hatt, 1), 1.0 / math.sqrt(hatt))
    # GCNConv layers (weights stored as (in, out)) + biases
    p["g1w"] = u(ks[next(k)], (h2, h3), 1.0 / math.sqrt(h2))
    p["g1b"] = u(ks[next(k)], (1, h3), 1.0 / math.sqrt(h2))
    p["g2w"] = u(ks[next(k)], (h3, h4), 1.0 / math.sqrt(h3))
    p["g2b"] = u(ks[next(k)], (1, h4), 1.0 / math.sqrt(h3))
    # Final fc: Linear(h4, 1)
    p["fcw"] = u(ks[next(k)], (h4, 1), 1.0 / math.sqrt(h4))
    p["fcb"] = u(ks[next(k)], (1, 1), 1.0 / math.sqrt(h4))
    return p


def normalized_adj_from_edge_index(edge_index, n):
    # GCNConv semantics: Ahat = D^{-1/2} (A + I) D^{-1/2}, A[dst, src] = 1.
    a = jnp.zeros((n, n), jnp.float32)
    a = a.at[edge_index[1], edge_index[0]].set(1.0)
    a = a + jnp.eye(n, dtype=jnp.float32)
    deg = a.sum(axis=1)
    dinv = jnp.where(deg > 0, 1.0 / jnp.sqrt(deg), 0.0)
    return dinv[:, None] * a * dinv[None, :]


def reference_forward(x, sadj, fadj, ahat, p):
    def gc(h, adj, w, b):
        return adj @ (h @ w) + b

    def gcn(h, adj, w1, b1, w2, b2):
        return gc(jnp.maximum(gc(h, adj, w1, b1), 0.0), adj, w2, b2)

    emb1 = gcn(x, sadj, p["s1w1"], p["s1b1"], p["s1w2"], p["s1b2"])
    com1 = gcn(x, sadj, p["cw1"], p["cb1"], p["cw2"], p["cb2"])
    com2 = gcn(x, fadj, p["cw1"], p["cb1"], p["cw2"], p["cb2"])
    emb2 = gcn(x, fadj, p["s2w1"], p["s2b1"], p["s2w2"], p["s2b2"])
    xcom = (com1 + com2) / 2.0
    z = jnp.stack([emb1, emb2, xcom], axis=1)                     # (N, 3, H2)
    w = jnp.tanh(z @ p["aw1"] + p["ab1"][0]) @ p["aw2"]           # (N, 3, 1)
    beta = jax.nn.softmax(w, axis=1)
    emb = (beta * z).sum(axis=1)
    h = jnp.maximum(ahat @ (emb @ p["g1w"]) + p["g1b"], 0.0)
    h = ahat @ (h @ p["g2w"]) + p["g2b"]
    return h @ p["fcw"] + p["fcb"]


if __name__ == "__main__":
    N, DIN, H1, H2, HATT, H3, H4 = 32, 16, 32, 32, 16, 32, 16

    key = jax.random.PRNGKey(0)
    kx, ks, kf, kp = jax.random.split(key, 4)

    x = jax.random.normal(kx, (N, DIN), jnp.float32)

    # Dense symmetric adjacencies for the GraphConvolution-based GCNs.
    def rand_adj(k):
        a = (jax.random.uniform(k, (N, N)) < 0.2).astype(jnp.float32)
        a = jnp.maximum(a, a.T)
        a = a + jnp.eye(N, dtype=jnp.float32)
        d = a.sum(axis=1)
        return a / d[:, None]  # row-normalized

    sadj = rand_adj(ks)
    fadj = rand_adj(kf)

    # edge_index: symmetric ring graph; normalized in glue (GCNConv semantics).
    src = jnp.concatenate([jnp.arange(N), (jnp.arange(N) + 1) % N])
    dst = jnp.concatenate([(jnp.arange(N) + 1) % N, jnp.arange(N)])
    edge_index = jnp.stack([src, dst], axis=0)
    ahat = normalized_adj_from_edge_index(edge_index, N)

    params = make_params(kp, DIN, H1, H2, HATT, H3, H4)

    # adj_dtype=jnp.bfloat16 is the recommended setting at scale on v6e/v7x
    # (halves adjacency DMA/VMEM, bf16-native MXU); f32 here since the tiny
    # test is prologue-bound and we keep full accuracy.
    y = st_graphattn_forward(x, sadj, fadj, ahat, params, adj_dtype=jnp.float32)
    jax.block_until_ready(y)

    with jax.default_matmul_precision("highest"):
        y_ref = reference_forward(x, sadj, fadj, ahat, params)

    assert y.shape == (N, 1)
    # Exact softmax reciprocal now -> tolerance tightened vs the previous 3e-3.
    assert jnp.allclose(y, y_ref, atol=1e-3, rtol=1e-3), "mismatch vs JAX reference"

    print("KERNEL_OK")
</pallas_src>

<mosaic_0001>
module attributes {stable_mosaic.version = 11 : i64} {
  func.func @kernel(%arg0: memref<32x16xf32, #tpu.memory_space<vmem>>, %arg1: memref<32x32xf32, #tpu.memory_space<vmem>>, %arg2: memref<32x32xf32, #tpu.memory_space<vmem>>, %arg3: memref<32x32xf32, #tpu.memory_space<vmem>>, %arg4: memref<248x128xf32, #tpu.memory_space<vmem>>, %arg5: memref<1x1xf32, #tpu.memory_space<smem>>, %arg6: memref<32x128xf32, #tpu.memory_space<vmem>>) attributes {dimension_semantics = [], scalar_prefetch = 0 : i64, scratch_operands = 0 : i64, tpu.core_type = #tpu.core_type<tc>} {
    %c0 = arith.constant 0 : index
    %c0_0 = arith.constant 0 : index
    %0 = vector.load %arg0[%c0, %c0_0] : memref<32x16xf32, #tpu.memory_space<vmem>>, vector<32x16xf32>
    %c0_1 = arith.constant 0 : index
    %c0_2 = arith.constant 0 : index
    %1 = vector.load %arg1[%c0_1, %c0_2] : memref<32x32xf32, #tpu.memory_space<vmem>>, vector<32x32xf32>
    %c0_3 = arith.constant 0 : index
    %c0_4 = arith.constant 0 : index
    %2 = vector.load %arg2[%c0_3, %c0_4] : memref<32x32xf32, #tpu.memory_space<vmem>>, vector<32x32xf32>
    %c0_5 = arith.constant 0 : index
    %c0_6 = arith.constant 0 : index
    %3 = vector.load %arg3[%c0_5, %c0_6] : memref<32x32xf32, #tpu.memory_space<vmem>>, vector<32x32xf32>
    %c0_7 = arith.constant 0 : index
    %c0_8 = arith.constant 0 : index
    %4 = vector.load %arg4[%c0_7, %c0_8] : memref<248x128xf32, #tpu.memory_space<vmem>>, vector<16x128xf32>
    %c16 = arith.constant 16 : index
    %c0_9 = arith.constant 0 : index
    %5 = vector.load %arg4[%c16, %c0_9] : memref<248x128xf32, #tpu.memory_space<vmem>>, vector<128x128xf32>
    %c144 = arith.constant 144 : index
    %c0_10 = arith.constant 0 : index
    %6 = vector.load %arg4[%c144, %c0_10] : memref<248x128xf32, #tpu.memory_space<vmem>>, vector<32x32xf32>
    %c176 = arith.constant 176 : index
    %c0_11 = arith.constant 0 : index
    %7 = vector.load %arg4[%c176, %c0_11] : memref<248x128xf32, #tpu.memory_space<vmem>>, vector<32x16xf32>
    %c208 = arith.constant 208 : index
    %c0_12 = arith.constant 0 : index
    %8 = vector.load %arg4[%c208, %c0_12] : memref<248x128xf32, #tpu.memory_space<vmem>>, vector<32x128xf32>
    %c240 = arith.constant 240 : index
    %c0_13 = arith.constant 0 : index
    %9 = vector.load %arg4[%c240, %c0_13] : memref<248x128xf32, #tpu.memory_space<vmem>>, vector<1x128xf32>
    %c241 = arith.constant 241 : index
    %c0_14 = arith.constant 0 : index
    %10 = vector.load %arg4[%c241, %c0_14] : memref<248x128xf32, #tpu.memory_space<vmem>>, vector<1x128xf32>
    %c242 = arith.constant 242 : index
    %c0_15 = arith.constant 0 : index
    %11 = vector.load %arg4[%c242, %c0_15] : memref<248x128xf32, #tpu.memory_space<vmem>>, vector<1x32xf32>
    %c243 = arith.constant 243 : index
    %c0_16 = arith.constant 0 : index
    %12 = vector.load %arg4[%c243, %c0_16] : memref<248x128xf32, #tpu.memory_space<vmem>>, vector<1x16xf32>
    %c244 = arith.constant 244 : index
    %c0_17 = arith.constant 0 : index
    %13 = vector.load %arg4[%c244, %c0_17] : memref<248x128xf32, #tpu.memory_space<vmem>>, vector<1x16xf32>
    %cst = arith.constant dense<0.000000e+00> : vector<32x128xf32>
    %14 = tpu.matmul %0, %4, %cst {dimension_numbers = #tpu.dot_dimension_numbers<[1], [0], [0], [1], [0, 0, 1, 1], [], []>} : vector<32x16xf32>, vector<16x128xf32>, vector<32x128xf32> -> vector<32x128xf32>
    %15 = vector.extract_strided_slice %14 {offsets = [0, 0], sizes = [32, 64], strides = [1, 1]} : vector<32x128xf32> to vector<32x64xf32>
    %cst_18 = arith.constant dense<0.000000e+00> : vector<32x64xf32>
    %16 = tpu.matmul %1, %15, %cst_18 {dimension_numbers = #tpu.dot_dimension_numbers<[1], [0], [0], [1], [0, 0, 1, 1], [], []>} : vector<32x32xf32>, vector<32x64xf32>, vector<32x64xf32> -> vector<32x64xf32>
    %17 = vector.extract_strided_slice %14 {offsets = [0, 64], sizes = [32, 64], strides = [1, 1]} : vector<32x128xf32> to vector<32x64xf32>
    %cst_19 = arith.constant dense<0.000000e+00> : vector<32x64xf32>
    %18 = tpu.matmul %2, %17, %cst_19 {dimension_numbers = #tpu.dot_dimension_numbers<[1], [0], [0], [1], [0, 0, 1, 1], [], []>} : vector<32x32xf32>, vector<32x64xf32>, vector<32x64xf32> -> vector<32x64xf32>
    %19 = tpu.concatenate %16, %18 in 1 : vector<32x64xf32>, vector<32x64xf32> -> vector<32x128xf32>
    %20 = vector.broadcast %9 : vector<1x128xf32> to vector<32x128xf32>
    %21 = arith.addf %19, %20 : vector<32x128xf32>
    %cst_20 = arith.constant 0.000000e+00 : f32
    %22 = vector.broadcast %cst_20 : f32 to vector<32x128xf32>
    %23 = arith.maximumf %21, %22 : vector<32x128xf32>
    %cst_21 = arith.constant dense<0.000000e+00> : vector<32x128xf32>
    %24 = tpu.matmul %23, %5, %cst_21 {dimension_numbers = #tpu.dot_dimension_numbers<[1], [0], [0], [1], [0, 0, 1, 1], [], []>} : vector<32x128xf32>, vector<128x128xf32>, vector<32x128xf32> -> vector<32x128xf32>
    %25 = vector.extract_strided_slice %24 {offsets = [0, 0], sizes = [32, 64], strides = [1, 1]} : vector<32x128xf32> to vector<32x64xf32>
    %cst_22 = arith.constant dense<0.000000e+00> : vector<32x64xf32>
    %26 = tpu.matmul %1, %25, %cst_22 {dimension_numbers = #tpu.dot_dimension_numbers<[1], [0], [0], [1], [0, 0, 1, 1], [], []>} : vector<32x32xf32>, vector<32x64xf32>, vector<32x64xf32> -> vector<32x64xf32>
    %27 = vector.extract_strided_slice %10 {offsets = [0, 0], sizes = [1, 64], strides = [1, 1]} : vector<1x128xf32> to vector<1x64xf32>
    %28 = vector.broadcast %27 : vector<1x64xf32> to vector<32x64xf32>
    %29 = arith.addf %26, %28 : vector<32x64xf32>
    %30 = vector.extract_strided_slice %24 {offsets = [0, 64], sizes = [32, 64], strides = [1, 1]} : vector<32x128xf32> to vector<32x64xf32>
    %cst_23 = arith.constant dense<0.000000e+00> : vector<32x64xf32>
    %31 = tpu.matmul %2, %30, %cst_23 {dimension_numbers = #tpu.dot_dimension_numbers<[1], [0], [0], [1], [0, 0, 1, 1], [], []>} : vector<32x32xf32>, vector<32x64xf32>, vector<32x64xf32> -> vector<32x64xf32>
    %32 = vector.extract_strided_slice %10 {offsets = [0, 64], sizes = [1, 64], strides = [1, 1]} : vector<1x128xf32> to vector<1x64xf32>
    %33 = vector.broadcast %32 : vector<1x64xf32> to vector<32x64xf32>
    %34 = arith.addf %31, %33 : vector<32x64xf32>
    %35 = vector.extract_strided_slice %29 {offsets = [0, 0], sizes = [32, 32], strides = [1, 1]} : vector<32x64xf32> to vector<32x32xf32>
    %36 = vector.extract_strided_slice %29 {offsets = [0, 32], sizes = [32, 32], strides = [1, 1]} : vector<32x64xf32> to vector<32x32xf32>
    %37 = vector.extract_strided_slice %34 {offsets = [0, 0], sizes = [32, 32], strides = [1, 1]} : vector<32x64xf32> to vector<32x32xf32>
    %38 = vector.extract_strided_slice %34 {offsets = [0, 32], sizes = [32, 32], strides = [1, 1]} : vector<32x64xf32> to vector<32x32xf32>
    %39 = arith.addf %36, %37 : vector<32x32xf32>
    %cst_24 = arith.constant 5.000000e-01 : f32
    %40 = vector.broadcast %cst_24 : f32 to vector<32x32xf32>
    %41 = arith.mulf %39, %40 : vector<32x32xf32>
    %42 = tpu.concatenate %35, %38, %41 in 0 : vector<32x32xf32>, vector<32x32xf32>, vector<32x32xf32> -> vector<96x32xf32>
    %cst_25 = arith.constant dense<0.000000e+00> : vector<96x16xf32>
    %43 = tpu.matmul %42, %7, %cst_25 {dimension_numbers = #tpu.dot_dimension_numbers<[1], [0], [0], [1], [0, 0, 1, 1], [], []>} : vector<96x32xf32>, vector<32x16xf32>, vector<96x16xf32> -> vector<96x16xf32>
    %44 = vector.broadcast %12 : vector<1x16xf32> to vector<96x16xf32>
    %45 = arith.addf %43, %44 : vector<96x16xf32>
    %46 = math.tanh %45 : vector<96x16xf32>
    %47 = vector.broadcast %13 : vector<1x16xf32> to vector<96x16xf32>
    %48 = arith.mulf %46, %47 : vector<96x16xf32>
    %cst_26 = arith.constant dense<0.000000e+00> : vector<96xf32>
    %49 = vector.multi_reduction <add>, %48, %cst_26 [1] : vector<96x16xf32> to vector<96xf32>
    %50 = vector.shape_cast %49 : vector<96xf32> to vector<96x1xf32>
    %51 = vector.extract_strided_slice %50 {offsets = [0, 0], sizes = [32, 1], strides = [1, 1]} : vector<96x1xf32> to vector<32x1xf32>
    %52 = vector.extract_strided_slice %50 {offsets = [32, 0], sizes = [32, 1], strides = [1, 1]} : vector<96x1xf32> to vector<32x1xf32>
    %53 = vector.extract_strided_slice %50 {offsets = [64, 0], sizes = [32, 1], strides = [1, 1]} : vector<96x1xf32> to vector<32x1xf32>
    %54 = arith.maximumf %51, %52 : vector<32x1xf32>
    %55 = arith.maximumf %54, %53 : vector<32x1xf32>
    %56 = arith.subf %51, %55 : vector<32x1xf32>
    %57 = math.exp %56 : vector<32x1xf32>
    %58 = arith.subf %52, %55 : vector<32x1xf32>
    %59 = math.exp %58 : vector<32x1xf32>
    %60 = arith.subf %53, %55 : vector<32x1xf32>
    %61 = math.exp %60 : vector<32x1xf32>
    %62 = arith.addf %57, %59 : vector<32x1xf32>
    %63 = arith.addf %62, %61 : vector<32x1xf32>
    %cst_27 = arith.constant 1.000000e+00 : f32
    %64 = vector.broadcast %cst_27 : f32 to vector<32x1xf32>
    %65 = arith.divf %64, %63 : vector<32x1xf32>
    %66 = arith.mulf %57, %65 : vector<32x1xf32>
    %67 = vector.broadcast %66 : vector<32x1xf32> to vector<32x32xf32>
    %68 = arith.mulf %67, %35 : vector<32x32xf32>
    %69 = arith.mulf %59, %65 : vector<32x1xf32>
    %70 = vector.broadcast %69 : vector<32x1xf32> to vector<32x32xf32>
    %71 = arith.mulf %70, %38 : vector<32x32xf32>
    %72 = arith.addf %68, %71 : vector<32x32xf32>
    %73 = arith.mulf %61, %65 : vector<32x1xf32>
    %74 = vector.broadcast %73 : vector<32x1xf32> to vector<32x32xf32>
    %75 = arith.mulf %74, %41 : vector<32x32xf32>
    %76 = arith.addf %72, %75 : vector<32x32xf32>
    %cst_28 = arith.constant dense<0.000000e+00> : vector<32x32xf32>
    %77 = tpu.matmul %76, %6, %cst_28 {dimension_numbers = #tpu.dot_dimension_numbers<[1], [0], [0], [1], [0, 0, 1, 1], [], []>} : vector<32x32xf32>, vector<32x32xf32>, vector<32x32xf32> -> vector<32x32xf32>
    %cst_29 = arith.constant dense<0.000000e+00> : vector<32x32xf32>
    %78 = tpu.matmul %3, %77, %cst_29 {dimension_numbers = #tpu.dot_dimension_numbers<[1], [0], [0], [1], [0, 0, 1, 1], [], []>} : vector<32x32xf32>, vector<32x32xf32>, vector<32x32xf32> -> vector<32x32xf32>
    %79 = vector.broadcast %11 : vector<1x32xf32> to vector<32x32xf32>
    %80 = arith.addf %78, %79 : vector<32x32xf32>
    %cst_30 = arith.constant 0.000000e+00 : f32
    %81 = vector.broadcast %cst_30 : f32 to vector<32x32xf32>
    %82 = arith.maximumf %80, %81 : vector<32x32xf32>
    %cst_31 = arith.constant dense<0.000000e+00> : vector<32x32xf32>
    %83 = tpu.matmul %3, %82, %cst_31 {dimension_numbers = #tpu.dot_dimension_numbers<[1], [0], [0], [1], [0, 0, 1, 1], [], []>} : vector<32x32xf32>, vector<32x32xf32>, vector<32x32xf32> -> vector<32x32xf32>
    %cst_32 = arith.constant dense<0.000000e+00> : vector<32x128xf32>
    %84 = tpu.matmul %83, %8, %cst_32 {dimension_numbers = #tpu.dot_dimension_numbers<[1], [0], [0], [1], [0, 0, 1, 1], [], []>} : vector<32x32xf32>, vector<32x128xf32>, vector<32x128xf32> -> vector<32x128xf32>
    %c0_33 = arith.constant 0 : index
    %c0_34 = arith.constant 0 : index
    %85 = memref.load %arg5[%c0_33, %c0_34] : memref<1x1xf32, #tpu.memory_space<smem>>
    %86 = vector.broadcast %85 : f32 to vector<32x128xf32>
    %87 = arith.addf %84, %86 : vector<32x128xf32>
    %c0_35 = arith.constant 0 : index
    %c0_36 = arith.constant 0 : index
    %88 = vector.load %arg6[%c0_35, %c0_36] : memref<32x128xf32, #tpu.memory_space<vmem>>, vector<32x128xf32>
    tpu.vector_store %arg6[%c0_35, %c0_36], %87 {strides = array<i32>} : memref<32x128xf32, #tpu.memory_space<vmem>>, vector<32x128xf32>,
    return
  }
}

</mosaic_0001>

<llo_original>
// kernel: tpu_custom_call.1
$region0: #{tpu_custom_call.1}
  #allocation0 [shape = 'u32[]', space=smem, size = 0x4, offset = 0x4, fixed_abs, tag = 'smem constant byte address 0x4 - core index']
  #allocation1 [shape = 'u32[72,128]{1,0:T(1,128)}', space=vmem, size = 0x9000, scoped, tag = 'internal scratch']
  #allocation2 [shape = 'f32[1,1]{1,0:T(1,128)S(6)}', space=smem, size = 0x200, scoped, tag = 'scoped memory for tpu_custom_call.1']
  %s0 = inlined_call_operand.vmem [shape: f32[32,16], index: 0, kind: input, shape index: {}]
  %s1 = inlined_call_operand.vmem [shape: f32[32,32], index: 1, kind: input, shape index: {}]
  %s2 = inlined_call_operand.hbm [shape: f32[32,32], index: 2, kind: input, shape index: {}]
  %s3 = inlined_call_operand.hbm [shape: f32[32,32], index: 3, kind: input, shape index: {}]
  %s4 = inlined_call_operand.hbm [shape: f32[248,128], index: 4, kind: input, shape index: {}]
  %s5 = inlined_call_operand.<no memory space> [shape: f32[1,1], index: 5, kind: input, shape index: {}]
  %s6 = inlined_call_operand.hbm [shape: f32[32,128], index: 6, kind: output, shape index: {}]
  %s7 = sld [smem:[#allocation0]]
  $region46: #{tpu_custom_call.1} parent=0
    _
  %s9 = ssub.s32 1, %s7
  %s10 = scalar_select 0, %s9, %s7
  %11 = sst [smem:[#allocation2]] %s5
  $region1: #{tpu_custom_call.1} parent=0
    #allocation3 [shape = 'u8[16384]{0}', space=vmem, size = 0x4000, scoped, tag = 'input window, operand 2, single buffered']
    #allocation4 [shape = 's32[1]{0}', space=sflag, size = 0x4, scoped, tag = 'scoped memory for tpu_custom_call.1']
    #allocation5 [shape = 's32[1]{0}', space=sflag, size = 0x4, scoped, tag = 'scoped memory for tpu_custom_call.1']
    #allocation6 [shape = 'u8[16384]{0}', space=vmem, size = 0x4000, scoped, tag = 'input window, operand 3, single buffered']
    #allocation7 [shape = 's32[1]{0}', space=sflag, size = 0x4, scoped, tag = 'scoped memory for tpu_custom_call.1']
    #allocation8 [shape = 'u8[126976]{0}', space=vmem, size = 0x1f000, scoped, tag = 'input window, operand 4, single buffered']
    #allocation9 [shape = 'u8[16384]{0}', space=vmem, size = 0x4000, scoped, tag = 'output window, operand 0, single buffered']
    %12 = vsyncpa [#allocation4], 0
    %13 = vsyncpa [#allocation7], 0
    %14 = vsyncpa [#allocation5], 0
    // Predicated region
    $region2: #{tpu_custom_call.1} parent=1 // pred_check
      _
    $region3: #{tpu_custom_call.1} parent=1 // pred_check_branch
      %16 = sbr.rel (0) target = $region5
    $region4: #{tpu_custom_call.1} parent=1 // pred_region
      _
    $region5: #{tpu_custom_call.1} parent=1 // pred_fallthru
      _
    // Predicated region
    $region6: #{tpu_custom_call.1} parent=1 // pred_check
      _
    $region7: #{tpu_custom_call.1} parent=1 // pred_check_branch
      %18 = sbr.rel (0) target = $region9
    $region8: #{tpu_custom_call.1} parent=1 // pred_region
      _
    $region9: #{tpu_custom_call.1} parent=1 // pred_fallthru
      _
    // Predicated region
    $region10: #{tpu_custom_call.1} parent=1 // pred_check
      _
    $region11: #{tpu_custom_call.1} parent=1 // pred_check_branch
      %20 = sbr.rel (0) target = $region13
    $region12: #{tpu_custom_call.1} parent=1 // pred_region
      %22 = vsyncadd [#allocation4], 0
      %s23 = sshll.u32 %s2, 4
      %s24 = int_to_ptr.hbm [resolvable:$true] %s23
      %s25 = sshll.u32 [#allocation3], 4
      %s26 = int_to_ptr.vmem [resolvable:$true] %s25
      %31 = dma.hbm_to_vmem [thread:$0]  %s24, 512, %s26, [#allocation4], 128, 128, 8
    $region13: #{tpu_custom_call.1} parent=1 // pred_fallthru
      _
    // Predicated region
    $region14: #{tpu_custom_call.1} parent=1 // pred_check
      _
    $region15: #{tpu_custom_call.1} parent=1 // pred_check_branch
      %33 = sbr.rel (0) target = $region17
    $region16: #{tpu_custom_call.1} parent=1 // pred_region
      %35 = vsyncadd [#allocation7], 0
      %s36 = sshll.u32 %s3, 4
      %s37 = int_to_ptr.hbm [resolvable:$true] %s36
      %s38 = sshll.u32 [#allocation6], 4
      %s39 = int_to_ptr.vmem [resolvable:$true] %s38
      %44 = dma.hbm_to_vmem [thread:$0]  %s37, 512, %s39, [#allocation7], 128, 128, 8
    $region17: #{tpu_custom_call.1} parent=1 // pred_fallthru
      _
    // Predicated region
    $region18: #{tpu_custom_call.1} parent=1 // pred_check
      _
    $region19: #{tpu_custom_call.1} parent=1 // pred_check_branch
      %46 = sbr.rel (0) target = $region21
    $region20: #{tpu_custom_call.1} parent=1 // pred_region
      %48 = vsyncadd [#allocation7], 0
      %s49 = sshll.u32 %s4, 4
      %s50 = int_to_ptr.hbm [resolvable:$true] %s49
      %s51 = sshll.u32 [#allocation8], 4
      %s52 = int_to_ptr.vmem [resolvable:$true] %s51
      %57 = dma.hbm_to_vmem [thread:$0]  %s50, 3968, %s52, [#allocation7], 128, 128, 8
    $region21: #{tpu_custom_call.1} parent=1 // pred_fallthru
      _
    // Predicated region
    $region22: #{tpu_custom_call.1} parent=1 // pred_check
      _
    $region23: #{tpu_custom_call.1} parent=1 // pred_check_branch
      %59 = sbr.rel (0) target = $region25
    $region24: #{tpu_custom_call.1} parent=1 // pred_region
      _
    $region25: #{tpu_custom_call.1} parent=1 // pred_fallthru
      _
    // Predicated region
    $region26: #{tpu_custom_call.1} parent=1 // pred_check
      _
    $region27: #{tpu_custom_call.1} parent=1 // pred_check_branch
      %61 = sbr.rel (0) target = $region29
    $region28: #{tpu_custom_call.1} parent=1 // pred_region
      %63 = dma.done [#allocation4], 512
    $region29: #{tpu_custom_call.1} parent=1 // pred_fallthru
      _
    // Predicated region
    $region30: #{tpu_custom_call.1} parent=1 // pred_check
      _
    $region31: #{tpu_custom_call.1} parent=1 // pred_check_branch
      %65 = sbr.rel (0) target = $region33
    $region32: #{tpu_custom_call.1} parent=1 // pred_region
      %67 = dma.done [#allocation7], 512
    $region33: #{tpu_custom_call.1} parent=1 // pred_fallthru
      _
    // Predicated region
    $region34: #{tpu_custom_call.1} parent=1 // pred_check
      _
    $region35: #{tpu_custom_call.1} parent=1 // pred_check_branch
      %69 = sbr.rel (0) target = $region37
    $region36: #{tpu_custom_call.1} parent=1 // pred_region
      %71 = dma.done [#allocation7], 3968
    $region37: #{tpu_custom_call.1} parent=1 // pred_fallthru
      _
    %v72 = vld [vmem:[%s0] sm:$0xff]
    %v73 = vld [vmem:[%s0 + $0x8] sm:$0xff]
    %v74 = vld [vmem:[%s0 + $0x10] sm:$0xff]
    %v75 = vld [vmem:[%s0 + $0x18] sm:$0xff]
    %v76 = vld [vmem:[%s1] sm:$0xff]
    %v77 = vld [vmem:[%s1 + $0x8] sm:$0xff]
    %v78 = vld [vmem:[%s1 + $0x10] sm:$0xff]
    %v79 = vld [vmem:[%s1 + $0x18] sm:$0xff]
    %v80 = vld [vmem:[#allocation3] sm:$0xff]
    %v81 = vld [vmem:[#allocation3 + $0x8] sm:$0xff]
    %v82 = vld [vmem:[#allocation3 + $0x10] sm:$0xff]
    %v83 = vld [vmem:[#allocation3 + $0x18] sm:$0xff]
    %v84 = vld [vmem:[#allocation6] sm:$0xff]
    %v85 = vld [vmem:[#allocation6 + $0x8] sm:$0xff]
    %v86 = vld [vmem:[#allocation6 + $0x10] sm:$0xff]
    %v87 = vld [vmem:[#allocation6 + $0x18] sm:$0xff]
    %v88 = vld [vmem:[#allocation8] sm:$0xff]
    %v89 = vld [vmem:[#allocation8 + $0x8] sm:$0xff]
    %v90 = vld [vmem:[#allocation8 + $0x10] sm:$0xff]
    %v91 = vld [vmem:[#allocation8 + $0x18] sm:$0xff]
    %v92 = vld [vmem:[#allocation8 + $0x20] sm:$0xff]
    %v93 = vld [vmem:[#allocation8 + $0x28] sm:$0xff]
    %v94 = vld [vmem:[#allocation8 + $0x30] sm:$0xff]
    %v95 = vld [vmem:[#allocation8 + $0x38] sm:$0xff]
    %v96 = vld [vmem:[#allocation8 + $0x40] sm:$0xff]
    %v97 = vld [vmem:[#allocation8 + $0x48] sm:$0xff]
    %v98 = vld [vmem:[#allocation8 + $0x50] sm:$0xff]
    %v99 = vld [vmem:[#allocation8 + $0x58] sm:$0xff]
    %v100 = vld [vmem:[#allocation8 + $0x60] sm:$0xff]
    %v101 = vld [vmem:[#allocation8 + $0x68] sm:$0xff]
    %v102 = vld [vmem:[#allocation8 + $0x70] sm:$0xff]
    %v103 = vld [vmem:[#allocation8 + $0x78] sm:$0xff]
    %v104 = vld [vmem:[#allocation8 + $0x80] sm:$0xff]
    %v105 = vld [vmem:[#allocation8 + $0x88] sm:$0xff]
    %v106 = vld [vmem:[#allocation8 + $0x90] sm:$0xff]
    %v107 = vld [vmem:[#allocation8 + $0x98] sm:$0xff]
    %v108 = vld [vmem:[#allocation8 + $0xa0] sm:$0xff]
    %v109 = vld [vmem:[#allocation8 + $0xa8] sm:$0xff]
    %v110 = vld [vmem:[#allocation8 + $0xb0] sm:$0xff]
    %v111 = vld [vmem:[#allocation8 + $0xb8] sm:$0xff]
    %v112 = vld [vmem:[#allocation8 + $0xc0] sm:$0xff]
    %v113 = vld [vmem:[#allocation8 + $0xc8] sm:$0xff]
    %v114 = vld [vmem:[#allocation8 + $0xd0] sm:$0xff]
    %v115 = vld [vmem:[#allocation8 + $0xd8] sm:$0xff]
    %v116 = vld [vmem:[#allocation8 + $0xe0] sm:$0xff]
    %v117 = vld [vmem:[#allocation8 + $0xe8] sm:$0xff]
    %v118 = vld [vmem:[#allocation8 + $0xf0] sm:$0x1]
    %v119 = vld [vmem:[#allocation8 + $0xf1] sm:$0x1]
    %v120 = vld [vmem:[#allocation8 + $0xf2] sm:$0x1]
    %v121 = vld [vmem:[#allocation8 + $0xf3] sm:$0x1]
    %v122 = vld [vmem:[#allocation8 + $0xf4] sm:$0x1]
    %vm123 = vcmask 130048
    %v125 = vsel %vm123, %v72, 0
    %v128 = vsel %vm123, %v73, 0
    %v131 = vsel %vm123, %v74, 0
    %v134 = vsel %vm123, %v75, 0
    %136 = vmatpush.msra.mxu0 0.0
    %137 = vmatpush.msra.mxu0 0.0
    %138 = vmatpush.msra.mxu0 0.0
    %139 = vmatpush.msra.mxu0 0.0
    %140 = vmatpush.msra.mxu0 0.0
    %141 = vmatpush.msra.mxu0 0.0
    %142 = vmatpush.msra.mxu0 0.0
    %143 = vmatpush.msra.mxu0 0.0
    %144 = vmatpush.msra.mxu0 0.0
    %145 = vmatpush.msra.mxu0 0.0
    %146 = vmatpush.msra.mxu0 0.0
    %147 = vmatpush.msra.mxu0 0.0
    %148 = vmatpush.msra.mxu0 0.0
    %149 = vmatpush.msra.mxu0 0.0
    %150 = vmatpush.msra.mxu0 %v89
    %151 = vmatpush.msra.mxu0 %v88
    %152 = vmatmul.f32.gmra.mxu0 %v125
    %v153 = vpop.f32.mrf.mxu0
    %v154 = vadd.f32 0.0, %v153
    %155 = vmatmul.f32.gmra.mxu0 %v128
    %v156 = vpop.f32.mrf.mxu0
    %v157 = vadd.f32 0.0, %v156
    %158 = vmatmul.f32.gmra.mxu0 %v131
    %v159 = vpop.f32.mrf.mxu0
    %v160 = vadd.f32 0.0, %v159
    %161 = vmatmul.f32.gmra.mxu0 %v134
    %v162 = vpop.f32.mrf.mxu0
    %v163 = vadd.f32 0.0, %v162
    %164 = vdwg.mxu0
    %vm165 = vcmask 261120
    %v167 = vsel %vm165, %v76, 0
    %v170 = vsel %vm165, %v77, 0
    %v173 = vsel %vm165, %v78, 0
    %v176 = vsel %vm165, %v79, 0
    %178 = vmatpush.msra.mxu0 0.0
    %179 = vmatpush.msra.mxu0 0.0
    %180 = vmatpush.msra.mxu0 0.0
    %181 = vmatpush.msra.mxu0 0.0
    %182 = vmatpush.msra.mxu0 0.0
    %183 = vmatpush.msra.mxu0 0.0
    %184 = vmatpush.msra.mxu0 0.0
    %185 = vmatpush.msra.mxu0 0.0
    %186 = vmatpush.msra.mxu0 0.0
    %187 = vmatpush.msra.mxu0 0.0
    %188 = vmatpush.msra.mxu0 0.0
    %189 = vmatpush.msra.mxu0 0.0
    %190 = vmatpush.msra.mxu0 %v163
    %191 = vmatpush.msra.mxu0 %v160
    %192 = vmatpush.msra.mxu0 %v157
    %193 = vmatpush.msra.mxu0 %v154
    %194 = vmatmul.f32.gmra.mxu0 %v167
    %v195 = vpop.f32.mrf.mxu0
    %v196 = vadd.f32 0.0, %v195
    %197 = vmatmul.f32.gmra.mxu0 %v170
    %v198 = vpop.f32.mrf.mxu0
    %v199 = vadd.f32 0.0, %v198
    %200 = vmatmul.f32.gmra.mxu0 %v173
    %v201 = vpop.f32.mrf.mxu0
    %v202 = vadd.f32 0.0, %v201
    %203 = vmatmul.f32.gmra.mxu0 %v176
    %v204 = vpop.f32.mrf.mxu0
    %v205 = vadd.f32 0.0, %v204
    %206 = vdwg.mxu0
    %211 = vrot.lane.b32.xlu0 %v154, 64
    %v212 = vpop.permute.xlu0 %211
    %213 = vrot.lane.b32.xlu0 %v157, 64
    %v214 = vpop.permute.xlu0 %213
    %215 = vrot.lane.b32.xlu0 %v160, 64
    %v216 = vpop.permute.xlu0 %215
    %217 = vrot.lane.b32.xlu0 %v163, 64
    %v218 = vpop.permute.xlu0 %217
    %v224 = vsel %vm165, %v80, 0
    %v227 = vsel %vm165, %v81, 0
    %v230 = vsel %vm165, %v82, 0
    %v233 = vsel %vm165, %v83, 0
    %235 = vmatpush.msra.mxu0 0.0
    %236 = vmatpush.msra.mxu0 0.0
    %237 = vmatpush.msra.mxu0 0.0
    %238 = vmatpush.msra.mxu0 0.0
    %239 = vmatpush.msra.mxu0 0.0
    %240 = vmatpush.msra.mxu0 0.0
    %241 = vmatpush.msra.mxu0 0.0
    %242 = vmatpush.msra.mxu0 0.0
    %243 = vmatpush.msra.mxu0 0.0
    %244 = vmatpush.msra.mxu0 0.0
    %245 = vmatpush.msra.mxu0 0.0
    %246 = vmatpush.msra.mxu0 0.0
    %247 = vmatpush.msra.mxu0 %v218
    %248 = vmatpush.msra.mxu0 %v216
    %249 = vmatpush.msra.mxu0 %v214
    %250 = vmatpush.msra.mxu0 %v212
    %251 = vmatmul.f32.gmra.mxu0 %v224
    %v252 = vpop.f32.mrf.mxu0
    %v253 = vadd.f32 0.0, %v252
    %254 = vmatmul.f32.gmra.mxu0 %v227
    %v255 = vpop.f32.mrf.mxu0
    %v256 = vadd.f32 0.0, %v255
    %257 = vmatmul.f32.gmra.mxu0 %v230
    %v258 = vpop.f32.mrf.mxu0
    %v259 = vadd.f32 0.0, %v258
    %260 = vmatmul.f32.gmra.mxu0 %v233
    %v261 = vpop.f32.mrf.mxu0
    %v262 = vadd.f32 0.0, %v261
    %263 = vdwg.mxu0
    %268 = vrot.lane.b32.xlu0 %v253, 64
    %v269 = vpop.permute.xlu0 %268
    %270 = vrot.lane.b32.xlu0 %v256, 64
    %v271 = vpop.permute.xlu0 %270
    %272 = vrot.lane.b32.xlu0 %v259, 64
    %v273 = vpop.permute.xlu0 %272
    %274 = vrot.lane.b32.xlu0 %v262, 64
    %v275 = vpop.permute.xlu0 %274
    %vm280 = vcmask 523264
    %v281 = vsel %vm280, %v196, %v269
    %v282 = vsel %vm280, %v199, %v271
    %v283 = vsel %vm280, %v202, %v273
    %v284 = vsel %vm280, %v205, %v275
    %v285 = vperm.slane %v118, 0
    %v286 = vadd.f32 %v281, %v285
    %v287 = vadd.f32 %v282, %v285
    %v288 = vadd.f32 %v283, %v285
    %v289 = vadd.f32 %v284, %v285
    %v290 = vmax.f32 %v286, 0.0
    %v291 = vmax.f32 %v287, 0.0
    %v292 = vmax.f32 %v288, 0.0
    %v293 = vmax.f32 %v289, 0.0
    %294 = vmatpush.msra.mxu0 %v105
    %295 = vmatpush.msra.mxu0 %v104
    %296 = vmatpush.msra.mxu0 %v103
    %297 = vmatpush.msra.mxu0 %v102
    %298 = vmatpush.msra.mxu0 %v101
    %299 = vmatpush.msra.mxu0 %v100
    %300 = vmatpush.msra.mxu0 %v99
    %301 = vmatpush.msra.mxu0 %v98
    %302 = vmatpush.msra.mxu0 %v97
    %303 = vmatpush.msra.mxu0 %v96
    %304 = vmatpush.msra.mxu0 %v95
    %305 = vmatpush.msra.mxu0 %v94
    %306 = vmatpush.msra.mxu0 %v93
    %307 = vmatpush.msra.mxu0 %v92
    %308 = vmatpush.msra.mxu0 %v91
    %309 = vmatpush.msra.mxu0 %v90
    %310 = vmatmul.f32.gmra.mxu0 %v290
    %v311 = vpop.f32.mrf.mxu0
    %v312 = vadd.f32 0.0, %v311
    %313 = vmatmul.f32.gmra.mxu0 %v291
    %v314 = vpop.f32.mrf.mxu0
    %v315 = vadd.f32 0.0, %v314
    %316 = vmatmul.f32.gmra.mxu0 %v292
    %v317 = vpop.f32.mrf.mxu0
    %v318 = vadd.f32 0.0, %v317
    %319 = vmatmul.f32.gmra.mxu0 %v293
    %v320 = vpop.f32.mrf.mxu0
    %v321 = vadd.f32 0.0, %v320
    %322 = vdwg.mxu0
    %v323 = vperm.slane %v119, 0
    %324 = vmatpush.msra.mxu0 0.0
    %325 = vmatpush.msra.mxu0 0.0
    %326 = vmatpush.msra.mxu0 0.0
    %327 = vmatpush.msra.mxu0 0.0
    %328 = vmatpush.msra.mxu0 0.0
    %329 = vmatpush.msra.mxu0 0.0
    %330 = vmatpush.msra.mxu0 0.0
    %331 = vmatpush.msra.mxu0 0.0
    %332 = vmatpush.msra.mxu0 0.0
    %333 = vmatpush.msra.mxu0 0.0
    %334 = vmatpush.msra.mxu0 0.0
    %335 = vmatpush.msra.mxu0 0.0
    %336 = vmatpush.msra.mxu0 %v321
    %337 = vmatpush.msra.mxu0 %v318
    %338 = vmatpush.msra.mxu0 %v315
    %339 = vmatpush.msra.mxu0 %v312
    %340 = vmatmul.f32.gmra.mxu0 %v167
    %v341 = vpop.f32.mrf.mxu0
    %v342 = vadd.f32 %v323, %v341
    %343 = vmatmul.f32.gmra.mxu0 %v170
    %v344 = vpop.f32.mrf.mxu0
    %v345 = vadd.f32 %v323, %v344
    %346 = vmatmul.f32.gmra.mxu0 %v173
    %v347 = vpop.f32.mrf.mxu0
    %v348 = vadd.f32 %v323, %v347
    %349 = vmatmul.f32.gmra.mxu0 %v176
    %v350 = vpop.f32.mrf.mxu0
    %v351 = vadd.f32 %v323, %v350
    %352 = vdwg.mxu0
    %357 = vrot.lane.b32.xlu0 %v312, 64
    %v358 = vpop.permute.xlu0 %357
    %359 = vrot.lane.b32.xlu0 %v315, 64
    %v360 = vpop.permute.xlu0 %359
    %361 = vrot.lane.b32.xlu0 %v318, 64
    %v362 = vpop.permute.xlu0 %361
    %363 = vrot.lane.b32.xlu0 %v321, 64
    %v364 = vpop.permute.xlu0 %363
    %370 = vrot.lane.b32.xlu0 %v323, 64
    %v371 = vpop.permute.xlu0 %370
    %373 = vmatpush.msra.mxu0 0.0
    %374 = vmatpush.msra.mxu0 0.0
    %375 = vmatpush.msra.mxu0 0.0
    %376 = vmatpush.msra.mxu0 0.0
    %377 = vmatpush.msra.mxu0 0.0
    %378 = vmatpush.msra.mxu0 0.0
    %379 = vmatpush.msra.mxu0 0.0
    %380 = vmatpush.msra.mxu0 0.0
    %381 = vmatpush.msra.mxu0 0.0
    %382 = vmatpush.msra.mxu0 0.0
    %383 = vmatpush.msra.mxu0 0.0
    %384 = vmatpush.msra.mxu0 0.0
    %385 = vmatpush.msra.mxu0 %v364
    %386 = vmatpush.msra.mxu0 %v362
    %387 = vmatpush.msra.mxu0 %v360
    %388 = vmatpush.msra.mxu0 %v358
    %389 = vmatmul.f32.gmra.mxu0 %v224
    %v390 = vpop.f32.mrf.mxu0
    %v391 = vadd.f32 %v371, %v390
    %392 = vmatmul.f32.gmra.mxu0 %v227
    %v393 = vpop.f32.mrf.mxu0
    %v394 = vadd.f32 %v371, %v393
    %395 = vmatmul.f32.gmra.mxu0 %v230
    %v396 = vpop.f32.mrf.mxu0
    %v397 = vadd.f32 %v371, %v396
    %398 = vmatmul.f32.gmra.mxu0 %v233
    %v399 = vpop.f32.mrf.mxu0
    %v400 = vadd.f32 %v371, %v399
    %401 = vdwg.mxu0
    %406 = vrot.lane.b32.xlu0 %v391, 32
    %v407 = vpop.permute.xlu0 %406
    %408 = vrot.lane.b32.xlu0 %v394, 32
    %v409 = vpop.permute.xlu0 %408
    %410 = vrot.lane.b32.xlu0 %v397, 32
    %v411 = vpop.permute.xlu0 %410
    %412 = vrot.lane.b32.xlu0 %v400, 32
    %v413 = vpop.permute.xlu0 %412
    %v418 = vadd.f32 %v342, %v407
    %v419 = vadd.f32 %v345, %v409
    %v420 = vadd.f32 %v348, %v411
    %v421 = vadd.f32 %v351, %v413
    %v422 = vmul.f32 %v418, 0.5
    %v423 = vmul.f32 %v419, 0.5
    %v424 = vmul.f32 %v420, 0.5
    %v425 = vmul.f32 %v421, 0.5
    %426 = vrot.lane.b32.xlu0 %v391, 96
    %v427 = vpop.permute.xlu0 %426
    %428 = vrot.lane.b32.xlu0 %v394, 96
    %v429 = vpop.permute.xlu0 %428
    %430 = vrot.lane.b32.xlu0 %v397, 96
    %v431 = vpop.permute.xlu0 %430
    %432 = vrot.lane.b32.xlu0 %v400, 96
    %v433 = vpop.permute.xlu0 %432
    %438 = vrot.lane.b32.xlu0 %v422, 96
    %v439 = vpop.permute.xlu0 %438
    %440 = vrot.lane.b32.xlu0 %v423, 96
    %v441 = vpop.permute.xlu0 %440
    %442 = vrot.lane.b32.xlu0 %v424, 96
    %v443 = vpop.permute.xlu0 %442
    %444 = vrot.lane.b32.xlu0 %v425, 96
    %v445 = vpop.permute.xlu0 %444
    %v446 = vperm.slane %v121, 0
    %v448 = vsel %vm165, %v342, 0
    %v451 = vsel %vm165, %v345, 0
    %v454 = vsel %vm165, %v348, 0
    %v457 = vsel %vm165, %v351, 0
    %v459 = vsel %vm165, %v427, 0
    %v461 = vsel %vm165, %v429, 0
    %v463 = vsel %vm165, %v431, 0
    %v465 = vsel %vm165, %v433, 0
    %v467 = vsel %vm165, %v439, 0
    %v469 = vsel %vm165, %v441, 0
    %v471 = vsel %vm165, %v443, 0
    %v473 = vsel %vm165, %v445, 0
    %475 = vmatpush.msra.mxu0 0.0
    %476 = vmatpush.msra.mxu0 0.0
    %477 = vmatpush.msra.mxu0 0.0
    %478 = vmatpush.msra.mxu0 0.0
    %479 = vmatpush.msra.mxu0 0.0
    %480 = vmatpush.msra.mxu0 0.0
    %481 = vmatpush.msra.mxu0 0.0
    %482 = vmatpush.msra.mxu0 0.0
    %483 = vmatpush.msra.mxu0 0.0
    %484 = vmatpush.msra.mxu0 0.0
    %485 = vmatpush.msra.mxu0 0.0
    %486 = vmatpush.msra.mxu0 0.0
    %487 = vmatpush.msra.mxu0 %v113
    %488 = vmatpush.msra.mxu0 %v112
    %489 = vmatpush.msra.mxu0 %v111
    %490 = vmatpush.msra.mxu0 %v110
    %491 = vmatmul.f32.gmra.mxu0 %v448
    %v492 = vpop.f32.mrf.mxu0
    %v493 = vadd.f32 %v446, %v492
    %494 = vmatmul.f32.gmra.mxu0 %v451
    %v495 = vpop.f32.mrf.mxu0
    %v496 = vadd.f32 %v446, %v495
    %497 = vmatmul.f32.gmra.mxu0 %v454
    %v498 = vpop.f32.mrf.mxu0
    %v499 = vadd.f32 %v446, %v498
    %500 = vmatmul.f32.gmra.mxu0 %v457
    %v501 = vpop.f32.mrf.mxu0
    %v502 = vadd.f32 %v446, %v501
    %503 = vmatmul.f32.gmra.mxu0 %v459
    %v504 = vpop.f32.mrf.mxu0
    %v505 = vadd.f32 %v446, %v504
    %506 = vmatmul.f32.gmra.mxu0 %v461
    %v507 = vpop.f32.mrf.mxu0
    %v508 = vadd.f32 %v446, %v507
    %509 = vmatmul.f32.gmra.mxu0 %v463
    %v510 = vpop.f32.mrf.mxu0
    %v511 = vadd.f32 %v446, %v510
    %512 = vmatmul.f32.gmra.mxu0 %v465
    %v513 = vpop.f32.mrf.mxu0
    %v514 = vadd.f32 %v446, %v513
    %515 = vmatmul.f32.gmra.mxu0 %v467
    %v516 = vpop.f32.mrf.mxu0
    %v517 = vadd.f32 %v446, %v516
    %518 = vmatmul.f32.gmra.mxu0 %v469
    %v519 = vpop.f32.mrf.mxu0
    %v520 = vadd.f32 %v446, %v519
    %521 = vmatmul.f32.gmra.mxu0 %v471
    %v522 = vpop.f32.mrf.mxu0
    %v523 = vadd.f32 %v446, %v522
    %524 = vmatmul.f32.gmra.mxu0 %v473
    %v525 = vpop.f32.mrf.mxu0
    %v526 = vadd.f32 %v446, %v525
    %527 = vdwg.mxu0
    %v528 = vtanh.pop %v493
    %v529 = vtanh.pop %v496
    %v530 = vtanh.pop %v499
    %v531 = vtanh.pop %v502
    %v532 = vtanh.pop %v505
    %v533 = vtanh.pop %v508
    %v534 = vtanh.pop %v511
    %v535 = vtanh.pop %v514
    %v536 = vtanh.pop %v517
    %v537 = vtanh.pop %v520
    %v538 = vtanh.pop %v523
    %v539 = vtanh.pop %v526
    %v540 = vperm.slane %v122, 0
    %v541 = vmul.f32 %v528, %v540
    %v542 = vmul.f32 %v529, %v540
    %v543 = vmul.f32 %v530, %v540
    %v544 = vmul.f32 %v531, %v540
    %v545 = vmul.f32 %v532, %v540
    %v546 = vmul.f32 %v533, %v540
    %v547 = vmul.f32 %v534, %v540
    %v548 = vmul.f32 %v535, %v540
    %v549 = vmul.f32 %v536, %v540
    %v550 = vmul.f32 %v537, %v540
    %v551 = vmul.f32 %v538, %v540
    %v552 = vmul.f32 %v539, %v540
    %v553 = vsel %vm123, %v541, 0.0
    %554 = vadd.xlane.f32.xlu0 %v553
    %v555 = vpop.xlane.xlu0 %554
    %v556 = vsel %vm123, %v542, 0.0
    %557 = vadd.xlane.f32.xlu0 %v556
    %v558 = vpop.xlane.xlu0 %557
    %v559 = vsel %vm123, %v543, 0.0
    %560 = vadd.xlane.f32.xlu0 %v559
    %v561 = vpop.xlane.xlu0 %560
    %v562 = vsel %vm123, %v544, 0.0
    %563 = vadd.xlane.f32.xlu0 %v562
    %v564 = vpop.xlane.xlu0 %563
    %v565 = vsel %vm123, %v545, 0.0
    %566 = vadd.xlane.f32.xlu0 %v565
    %v567 = vpop.xlane.xlu0 %566
    %v568 = vsel %vm123, %v546, 0.0
    %569 = vadd.xlane.f32.xlu0 %v568
    %v570 = vpop.xlane.xlu0 %569
    %v571 = vsel %vm123, %v547, 0.0
    %572 = vadd.xlane.f32.xlu0 %v571
    %v573 = vpop.xlane.xlu0 %572
    %v574 = vsel %vm123, %v548, 0.0
    %575 = vadd.xlane.f32.xlu0 %v574
    %v576 = vpop.xlane.xlu0 %575
    %v577 = vsel %vm123, %v549, 0.0
    %578 = vadd.xlane.f32.xlu0 %v577
    %v579 = vpop.xlane.xlu0 %578
    %v580 = vsel %vm123, %v550, 0.0
    %581 = vadd.xlane.f32.xlu0 %v580
    %v582 = vpop.xlane.xlu0 %581
    %v583 = vsel %vm123, %v551, 0.0
    %584 = vadd.xlane.f32.xlu0 %v583
    %v585 = vpop.xlane.xlu0 %584
    %v586 = vsel %vm123, %v552, 0.0
    %587 = vadd.xlane.f32.xlu0 %v586
    %v588 = vpop.xlane.xlu0 %587
    %v589 = vmax.f32 %v555, %v567
    %v590 = vmax.f32 %v558, %v570
    %v591 = vmax.f32 %v561, %v573
    %v592 = vmax.f32 %v564, %v576
    %v593 = vmax.f32 %v589, %v579
    %v594 = vmax.f32 %v590, %v582
    %v595 = vmax.f32 %v591, %v585
    %v596 = vmax.f32 %v592, %v588
    %v597 = vsub.f32 %v555, %v593
    %v598 = vsub.f32 %v558, %v594
    %v599 = vsub.f32 %v561, %v595
    %v600 = vsub.f32 %v564, %v596
    %v601 = vmul.f32 %v597, 1.442695
    %v602 = vpow.pop %v601
    %v603 = vmul.f32 %v598, 1.442695
    %v604 = vpow.pop %v603
    %v605 = vmul.f32 %v599, 1.442695
    %v606 = vpow.pop %v605
    %v607 = vmul.f32 %v600, 1.442695
    %v608 = vpow.pop %v607
    %v609 = vsub.f32 %v567, %v593
    %v610 = vsub.f32 %v570, %v594
    %v611 = vsub.f32 %v573, %v595
    %v612 = vsub.f32 %v576, %v596
    %v613 = vmul.f32 %v609, 1.442695
    %v614 = vpow.pop %v613
    %v615 = vmul.f32 %v610, 1.442695
    %v616 = vpow.pop %v615
    %v617 = vmul.f32 %v611, 1.442695
    %v618 = vpow.pop %v617
    %v619 = vmul.f32 %v612, 1.442695
    %v620 = vpow.pop %v619
    %v621 = vsub.f32 %v579, %v593
    %v622 = vsub.f32 %v582, %v594
    %v623 = vsub.f32 %v585, %v595
    %v624 = vsub.f32 %v588, %v596
    %v625 = vmul.f32 %v621, 1.442695
    %v626 = vpow.pop %v625
    %v627 = vmul.f32 %v622, 1.442695
    %v628 = vpow.pop %v627
    %v629 = vmul.f32 %v623, 1.442695
    %v630 = vpow.pop %v629
    %v631 = vmul.f32 %v624, 1.442695
    %v632 = vpow.pop %v631
    %v633 = vadd.f32 %v602, %v614
    %v634 = vadd.f32 %v604, %v616
    %v635 = vadd.f32 %v606, %v618
    %v636 = vadd.f32 %v608, %v620
    %v637 = vadd.f32 %v633, %v626
    %v638 = vadd.f32 %v634, %v628
    %v639 = vadd.f32 %v635, %v630
    %v640 = vadd.f32 %v636, %v632
    %v641 = vrcp.pop %v637
    %v642 = vmul.f32 %v637, %v641
    %v643 = vsub.f32 1.0, %v642
    %v644 = vmul.f32 %v641, %v643
    %v645 = vadd.f32 %v641, %v644
    %vm646 = vweird.f32 %v637
    %vm647 = vweird.f32 %v641
    %vm648 = vmor %vm646, %vm647
    %v649 = vsel %vm648, %v641, %v645
    %v650 = vand.u32 2147483647, %v637
    %vm651 = vcmp.eq.f32.partialorder %v650, 8.507059e+37
    %v652 = vand.u32 %v637, 2147483648
    %v653 = vor.u32 1.1754944e-38, %v652
    %v654 = vsel %vm651, %v653, %v649
    %v655 = vmul.f32 1.0, %v654
    %v656 = vrcp.pop %v638
    %v657 = vmul.f32 %v638, %v656
    %v658 = vsub.f32 1.0, %v657
    %v659 = vmul.f32 %v656, %v658
    %v660 = vadd.f32 %v656, %v659
    %vm661 = vweird.f32 %v638
    %vm662 = vweird.f32 %v656
    %vm663 = vmor %vm661, %vm662
    %v664 = vsel %vm663, %v656, %v660
    %v665 = vand.u32 2147483647, %v638
    %vm666 = vcmp.eq.f32.partialorder %v665, 8.507059e+37
    %v667 = vand.u32 %v638, 2147483648
    %v668 = vor.u32 1.1754944e-38, %v667
    %v669 = vsel %vm666, %v668, %v664
    %v670 = vmul.f32 1.0, %v669
    %v671 = vrcp.pop %v639
    %v672 = vmul.f32 %v639, %v671
    %v673 = vsub.f32 1.0, %v672
    %v674 = vmul.f32 %v671, %v673
    %v675 = vadd.f32 %v671, %v674
    %vm676 = vweird.f32 %v639
    %vm677 = vweird.f32 %v671
    %vm678 = vmor %vm676, %vm677
    %v679 = vsel %vm678, %v671, %v675
    %v680 = vand.u32 2147483647, %v639
    %vm681 = vcmp.eq.f32.partialorder %v680, 8.507059e+37
    %v682 = vand.u32 %v639, 2147483648
    %v683 = vor.u32 1.1754944e-38, %v682
    %v684 = vsel %vm681, %v683, %v679
    %v685 = vmul.f32 1.0, %v684
    %v686 = vrcp.pop %v640
    %v687 = vmul.f32 %v640, %v686
    %v688 = vsub.f32 1.0, %v687
    %v689 = vmul.f32 %v686, %v688
    %v690 = vadd.f32 %v686, %v689
    %vm691 = vweird.f32 %v640
    %vm692 = vweird.f32 %v686
    %vm693 = vmor %vm691, %vm692
    %v694 = vsel %vm693, %v686, %v690
    %v695 = vand.u32 2147483647, %v640
    %vm696 = vcmp.eq.f32.partialorder %v695, 8.507059e+37
    %v697 = vand.u32 %v640, 2147483648
    %v698 = vor.u32 1.1754944e-38, %v697
    %v699 = vsel %vm696, %v698, %v694
    %v700 = vmul.f32 1.0, %v699
    %v701 = vmul.f32 %v602, %v655
    %v702 = vmul.f32 %v604, %v670
    %v703 = vmul.f32 %v606, %v685
    %v704 = vmul.f32 %v608, %v700
    %v705 = vmul.f32 %v701, %v342
    %v706 = vmul.f32 %v702, %v345
    %v707 = vmul.f32 %v703, %v348
    %v708 = vmul.f32 %v704, %v351
    %v709 = vmul.f32 %v614, %v655
    %v710 = vmul.f32 %v616, %v670
    %v711 = vmul.f32 %v618, %v685
    %v712 = vmul.f32 %v620, %v700
    %v713 = vmul.f32 %v709, %v391
    %v714 = vmul.f32 %v710, %v394
    %v715 = vmul.f32 %v711, %v397
    %v716 = vmul.f32 %v712, %v400
    %721 = vrot.lane.b32.xlu0 %v713, 96
    %v722 = vpop.permute.xlu0 %721
    %723 = vrot.lane.b32.xlu0 %v714, 96
    %v724 = vpop.permute.xlu0 %723
    %725 = vrot.lane.b32.xlu0 %v715, 96
    %v726 = vpop.permute.xlu0 %725
    %727 = vrot.lane.b32.xlu0 %v716, 96
    %v728 = vpop.permute.xlu0 %727
    %v733 = vadd.f32 %v705, %v722
    %v734 = vadd.f32 %v706, %v724
    %v735 = vadd.f32 %v707, %v726
    %v736 = vadd.f32 %v708, %v728
    %v737 = vmul.f32 %v626, %v655
    %v738 = vmul.f32 %v628, %v670
    %v739 = vmul.f32 %v630, %v685
    %v740 = vmul.f32 %v632, %v700
    %v741 = vmul.f32 %v737, %v422
    %v742 = vmul.f32 %v738, %v423
    %v743 = vmul.f32 %v739, %v424
    %v744 = vmul.f32 %v740, %v425
    %749 = vrot.lane.b32.xlu0 %v741, 96
    %v750 = vpop.permute.xlu0 %749
    %751 = vrot.lane.b32.xlu0 %v742, 96
    %v752 = vpop.permute.xlu0 %751
    %753 = vrot.lane.b32.xlu0 %v743, 96
    %v754 = vpop.permute.xlu0 %753
    %755 = vrot.lane.b32.xlu0 %v744, 96
    %v756 = vpop.permute.xlu0 %755
    %v761 = vadd.f32 %v733, %v750
    %v762 = vadd.f32 %v734, %v752
    %v763 = vadd.f32 %v735, %v754
    %v764 = vadd.f32 %v736, %v756
    %v766 = vsel %vm165, %v761, 0
    %v769 = vsel %vm165, %v762, 0
    %v772 = vsel %vm165, %v763, 0
    %v775 = vsel %vm165, %v764, 0
    %777 = vmatpush.msra.mxu0 0.0
    %778 = vmatpush.msra.mxu0 0.0
    %779 = vmatpush.msra.mxu0 0.0
    %780 = vmatpush.msra.mxu0 0.0
    %781 = vmatpush.msra.mxu0 0.0
    %782 = vmatpush.msra.mxu0 0.0
    %783 = vmatpush.msra.mxu0 0.0
    %784 = vmatpush.msra.mxu0 0.0
    %785 = vmatpush.msra.mxu0 0.0
    %786 = vmatpush.msra.mxu0 0.0
    %787 = vmatpush.msra.mxu0 0.0
    %788 = vmatpush.msra.mxu0 0.0
    %789 = vmatpush.msra.mxu0 %v109
    %790 = vmatpush.msra.mxu0 %v108
    %791 = vmatpush.msra.mxu0 %v107
    %792 = vmatpush.msra.mxu0 %v106
    %793 = vmatmul.f32.gmra.mxu0 %v766
    %v794 = vpop.f32.mrf.mxu0
    %v795 = vadd.f32 0.0, %v794
    %796 = vmatmul.f32.gmra.mxu0 %v769
    %v797 = vpop.f32.mrf.mxu0
    %v798 = vadd.f32 0.0, %v797
    %799 = vmatmul.f32.gmra.mxu0 %v772
    %v800 = vpop.f32.mrf.mxu0
    %v801 = vadd.f32 0.0, %v800
    %802 = vmatmul.f32.gmra.mxu0 %v775
    %v803 = vpop.f32.mrf.mxu0
    %v804 = vadd.f32 0.0, %v803
    %805 = vdwg.mxu0
    %v806 = vperm.slane %v120, 0
    %v808 = vsel %vm165, %v84, 0
    %v811 = vsel %vm165, %v85, 0
    %v814 = vsel %vm165, %v86, 0
    %v817 = vsel %vm165, %v87, 0
    %819 = vmatpush.msra.mxu0 0.0
    %820 = vmatpush.msra.mxu0 0.0
    %821 = vmatpush.msra.mxu0 0.0
    %822 = vmatpush.msra.mxu0 0.0
    %823 = vmatpush.msra.mxu0 0.0
    %824 = vmatpush.msra.mxu0 0.0
    %825 = vmatpush.msra.mxu0 0.0
    %826 = vmatpush.msra.mxu0 0.0
    %827 = vmatpush.msra.mxu0 0.0
    %828 = vmatpush.msra.mxu0 0.0
    %829 = vmatpush.msra.mxu0 0.0
    %830 = vmatpush.msra.mxu0 0.0
    %831 = vmatpush.msra.mxu0 %v804
    %832 = vmatpush.msra.mxu0 %v801
    %833 = vmatpush.msra.mxu0 %v798
    %834 = vmatpush.msra.mxu0 %v795
    %835 = vmatmul.f32.gmra.mxu0 %v808
    %v836 = vpop.f32.mrf.mxu0
    %v837 = vadd.f32 %v806, %v836
    %838 = vmatmul.f32.gmra.mxu0 %v811
    %v839 = vpop.f32.mrf.mxu0
    %v840 = vadd.f32 %v806, %v839
    %841 = vmatmul.f32.gmra.mxu0 %v814
    %v842 = vpop.f32.mrf.mxu0
    %v843 = vadd.f32 %v806, %v842
    %844 = vmatmul.f32.gmra.mxu0 %v817
    %v845 = vpop.f32.mrf.mxu0
    %v846 = vadd.f32 %v806, %v845
    %847 = vdwg.mxu0
    %v848 = vmax.f32 %v837, 0.0
    %v849 = vmax.f32 %v840, 0.0
    %v850 = vmax.f32 %v843, 0.0
    %v851 = vmax.f32 %v846, 0.0
    %852 = vmatpush.msra.mxu0 0.0
    %853 = vmatpush.msra.mxu0 0.0
    %854 = vmatpush.msra.mxu0 0.0
    %855 = vmatpush.msra.mxu0 0.0
    %856 = vmatpush.msra.mxu0 0.0
    %857 = vmatpush.msra.mxu0 0.0
    %858 = vmatpush.msra.mxu0 0.0
    %859 = vmatpush.msra.mxu0 0.0
    %860 = vmatpush.msra.mxu0 0.0
    %861 = vmatpush.msra.mxu0 0.0
    %862 = vmatpush.msra.mxu0 0.0
    %863 = vmatpush.msra.mxu0 0.0
    %864 = vmatpush.msra.mxu0 %v851
    %865 = vmatpush.msra.mxu0 %v850
    %866 = vmatpush.msra.mxu0 %v849
    %867 = vmatpush.msra.mxu0 %v848
    %868 = vmatmul.f32.gmra.mxu0 %v808
    %v869 = vpop.f32.mrf.mxu0
    %v870 = vadd.f32 0.0, %v869
    %871 = vmatmul.f32.gmra.mxu0 %v811
    %v872 = vpop.f32.mrf.mxu0
    %v873 = vadd.f32 0.0, %v872
    %874 = vmatmul.f32.gmra.mxu0 %v814
    %v875 = vpop.f32.mrf.mxu0
    %v876 = vadd.f32 0.0, %v875
    %877 = vmatmul.f32.gmra.mxu0 %v817
    %v878 = vpop.f32.mrf.mxu0
    %v879 = vadd.f32 0.0, %v878
    %880 = vdwg.mxu0
    %s881 = sld [smem:[#allocation2]]
    %v882 = vstv %s881
    %v884 = vsel %vm165, %v870, 0
    %v887 = vsel %vm165, %v873, 0
    %v890 = vsel %vm165, %v876, 0
    %v893 = vsel %vm165, %v879, 0
    %895 = vmatpush.msra.mxu0 0.0
    %896 = vmatpush.msra.mxu0 0.0
    %897 = vmatpush.msra.mxu0 0.0
    %898 = vmatpush.msra.mxu0 0.0
    %899 = vmatpush.msra.mxu0 0.0
    %900 = vmatpush.msra.mxu0 0.0
    %901 = vmatpush.msra.mxu0 0.0
    %902 = vmatpush.msra.mxu0 0.0
    %903 = vmatpush.msra.mxu0 0.0
    %904 = vmatpush.msra.mxu0 0.0
    %905 = vmatpush.msra.mxu0 0.0
    %906 = vmatpush.msra.mxu0 0.0
    %907 = vmatpush.msra.mxu0 %v117
    %908 = vmatpush.msra.mxu0 %v116
    %909 = vmatpush.msra.mxu0 %v115
    %910 = vmatpush.msra.mxu0 %v114
    %911 = vmatmul.f32.gmra.mxu0 %v884
    %v912 = vpop.f32.mrf.mxu0
    %v913 = vadd.f32 %v882, %v912
    %914 = vmatmul.f32.gmra.mxu0 %v887
    %v915 = vpop.f32.mrf.mxu0
    %v916 = vadd.f32 %v882, %v915
    %917 = vmatmul.f32.gmra.mxu0 %v890
    %v918 = vpop.f32.mrf.mxu0
    %v919 = vadd.f32 %v882, %v918
    %920 = vmatmul.f32.gmra.mxu0 %v893
    %v921 = vpop.f32.mrf.mxu0
    %v922 = vadd.f32 %v882, %v921
    %923 = vdwg.mxu0
    %924 = vst [vmem:[#allocation9] sm:$0xff] %v913
    %925 = vst [vmem:[#allocation9 + $0x8] sm:$0xff] %v916
    %926 = vst [vmem:[#allocation9 + $0x10] sm:$0xff] %v919
    %927 = vst [vmem:[#allocation9 + $0x18] sm:$0xff] %v922
    // Predicated region
    $region38: #{tpu_custom_call.1} parent=1 // pred_check
      _
    $region39: #{tpu_custom_call.1} parent=1 // pred_check_branch
      %929 = sbr.rel (0) target = $region41
    $region40: #{tpu_custom_call.1} parent=1 // pred_region
      %931 = vsyncadd [#allocation5], 0
      %s932 = sshll.u32 [#allocation9], 4
      %s933 = int_to_ptr.vmem [resolvable:$true] %s932
      %s934 = sshll.u32 %s6, 4
      %s935 = int_to_ptr.hbm [resolvable:$true] %s934
      %940 = dma.vmem_to_hbm [thread:$0]  %s933, 512, %s935, [#allocation5], 128, 128, 8
    $region41: #{tpu_custom_call.1} parent=1 // pred_fallthru
      _
    // Predicated region
    $region42: #{tpu_custom_call.1} parent=1 // pred_check
      _
    $region43: #{tpu_custom_call.1} parent=1 // pred_check_branch
      %942 = sbr.rel (0) target = $region45
    $region44: #{tpu_custom_call.1} parent=1 // pred_region
      %944 = dma.done [#allocation5], 512
    $region45: #{tpu_custom_call.1} parent=1 // pred_fallthru
      _
    %945 = vsyncpa [#allocation4], 1
    %946 = vsyncpa [#allocation7], 1
    %947 = vsyncpa [#allocation5], 1

</llo_original>
